<compile_context>
chip_gen: v6e
topology: v6e:2x2x1
jax: 0.10.0
libtpu: 0.0.40
codegen_flags: <defaults>
</compile_context>

<pallas_src>
import functools

import jax
import jax.numpy as jnp
from jax.experimental import pallas as pl
from jax.experimental.pallas import tpu as pltpu


def window_index(w_size, bsz, length):
    """JAX equivalent of the torch window_index helper (flat clamped indices)."""
    w2 = (w_size - 1) // 2
    pos = jnp.arange(length, dtype=jnp.int32)[None, :, None]          # (1, L, 1)
    offs = jnp.arange(-w2, w2 + 1, dtype=jnp.int32)[None, None, :]    # (1, 1, W)
    idx = jnp.clip(pos + offs, 0, length - 1)                         # (1, L, W)
    idx = idx + (jnp.arange(bsz, dtype=jnp.int32) * length)[:, None, None]
    return idx                                                        # (B, L, W)


def _elem_loss(diff, lossfunc):
    if lossfunc == 'l1loss':
        return jnp.abs(diff)
    if lossfunc == 'l2loss':
        return diff * diff
    if lossfunc == 'smoothl1':
        ad = jnp.abs(diff)
        return jnp.where(ad < 1.0, 0.5 * diff * diff, ad - 0.5)
    raise ValueError(f"unknown lossfunc {lossfunc}")


def _pick_chunk(length, target=512):
    """Largest multiple-of-128 divisor of length that is <= target (else length)."""
    if length <= target:
        return length
    best = None
    for c in range(128, target + 1, 128):
        if length % c == 0:
            best = c
    return best if best is not None else length


def _prep_windows(x, w2, chunk, n_chunks):
    """(B, L, D) -> (B, n_chunks, D, chunk + 2*w2) edge-padded overlapping windows.

    Edge replication is exactly the torch clamp(l+o, 0, L-1) window indexing, so
    the kernel needs only static lane slices of each window.
    """
    B, L, d = x.shape
    xt = jnp.swapaxes(x, 1, 2)                                        # (B, d, L)
    xp = jnp.pad(xt, ((0, 0), (0, 0), (w2, w2)), mode='edge')         # (B, d, L+2w2)
    ext = chunk + 2 * w2
    if n_chunks == 1:
        return xp[:, None, :, :]                                      # (B, 1, d, ext)
    col = (jnp.arange(n_chunks, dtype=jnp.int32)[:, None] * chunk
           + jnp.arange(ext, dtype=jnp.int32)[None, :]).reshape(-1)
    xw = jnp.take(xp, col, axis=2).reshape(B, d, n_chunks, ext)
    return jnp.swapaxes(xw, 1, 2)                                     # (B, n_chunks, d, ext)


def _wr_angle_kernel(t_ref, s_ref, mask_ref, out_ref, *, lossfunc, offsets, w2, chunk):
    """One (batch b, lane-chunk k) step: partial masked Gram-difference loss."""
    n = len(offsets)
    eps_sq = 1e-24  # (1e-12)^2 — matches F.normalize eps semantics

    def gram_rows(ref):
        # ref is the (D, chunk + 2*w2) edge-padded window; every shifted copy is
        # a static lane slice of it (pad == clamp-to-edge), reduction over D
        # (sublanes), outputs stay lane-dense over the chunk.
        ext = ref[...].astype(jnp.float32)                            # (D, chunk+2w2)
        center = ext[:, w2:w2 + chunk]
        subs = [center - ext[:, w2 + o:w2 + o + chunk] for o in offsets]
        nsq = [jnp.sum(s * s, axis=0, keepdims=True) for s in subs]   # (1, chunk)
        # divide-by-max(||x||, eps)  ==  multiply-by-rsqrt(max(||x||^2, eps^2))
        inv = [jax.lax.rsqrt(jnp.maximum(q, eps_sq)) for q in nsq]
        diag = [q * iv * iv for q, iv in zip(nsq, inv)]
        off = []
        for i in range(n):
            for j in range(i + 1, n):
                raw = jnp.sum(subs[i] * subs[j], axis=0, keepdims=True)
                off.append(raw * inv[i] * inv[j])
        return jnp.concatenate(off, axis=0), jnp.concatenate(diag, axis=0)

    t_off, t_diag = gram_rows(t_ref)
    s_off, s_diag = gram_rows(s_ref)

    m = mask_ref[...].astype(jnp.float32)                             # (1, chunk)

    # Masking the difference == masking both Gram matrices (mask is per (b, l)).
    f_off = _elem_loss((s_off - t_off) * m, lossfunc)                 # (n_pairs, chunk)
    f_diag = _elem_loss((s_diag - t_diag) * m, lossfunc)              # (n,       chunk)

    # Symmetric Gram: off-diagonal pairs count twice.  The center offset's
    # row/column is identically zero for teacher and student -> contributes 0.
    total = 2.0 * jnp.sum(f_off) + jnp.sum(f_diag)

    @pl.when(pl.program_id(1) == 0)
    def _():
        out_ref[...] = jnp.zeros_like(out_ref)
    out_ref[...] += total


def wr_angle_window(t_embed, s_embed, attention_mask, lossfunc='l1loss', window=5):
    assert window % 2 == 1 and window >= 3
    bsz, layer_num, max_len, dim = t_embed.shape
    sdim = s_embed.shape[-1]
    w2 = window // 2
    assert w2 < max_len
    B = bsz * layer_num

    chunk = _pick_chunk(max_len)
    n_chunks = max_len // chunk
    ext = chunk + 2 * w2
    offsets = [o for o in range(-w2, w2 + 1) if o != 0]

    # Hoisted layout plumbing (done once at HBM bandwidth by XLA).
    t_w = _prep_windows(t_embed.reshape(B, max_len, dim), w2, chunk, n_chunks)
    s_w = _prep_windows(s_embed.reshape(B, max_len, sdim), w2, chunk, n_chunks)
    mask = jnp.broadcast_to(
        attention_mask.astype(jnp.float32)[:, None, :],
        (bsz, layer_num, max_len)).reshape(B, 1, max_len)

    # Scoped-VMEM budget: double-buffered input blocks + f32 working set, with
    # headroom; >= 32 MiB, capped at 64 MiB (v7x per-core physical VMEM).
    t_item = jnp.dtype(t_w.dtype).itemsize
    s_item = jnp.dtype(s_w.dtype).itemsize
    block_bytes = ext * (dim * t_item + sdim * s_item) + chunk * 4
    work_bytes = (len(offsets) + 2) * (dim + sdim) * chunk * 4
    vmem_limit = int(min(max(2 * block_bytes + work_bytes + (4 << 20), 32 << 20),
                         64 << 20))

    kernel = functools.partial(_wr_angle_kernel, lossfunc=lossfunc,
                               offsets=offsets, w2=w2, chunk=chunk)

    partials = pl.pallas_call(
        kernel,
        out_shape=jax.ShapeDtypeStruct((B, 1, 1), jnp.float32),
        grid_spec=pltpu.PrefetchScalarGridSpec(
            num_scalar_prefetch=0,
            grid=(B, n_chunks),
            in_specs=[
                pl.BlockSpec((pl.Squeezed(), pl.Squeezed(), dim, ext),
                             lambda b, k: (b, k, 0, 0)),
                pl.BlockSpec((pl.Squeezed(), pl.Squeezed(), sdim, ext),
                             lambda b, k: (b, k, 0, 0)),
                pl.BlockSpec((pl.Squeezed(), 1, chunk),
                             lambda b, k: (b, 0, k)),
            ],
            out_specs=pl.BlockSpec((pl.Squeezed(), 1, 1),
                                   lambda b, k: (b, 0, 0)),
        ),
        compiler_params=pltpu.CompilerParams(
            dimension_semantics=("parallel", "arbitrary"),
            vmem_limit_bytes=vmem_limit),
    )(t_w, s_w, mask)

    loss_sum = jnp.sum(partials)
    denom = (jnp.sum(attention_mask.astype(jnp.float32)) * layer_num
             * (window * window))   # == mask.sum() in the torch module
    return loss_sum / denom


def _reference(t_embed, s_embed, attention_mask, lossfunc, window):
    """Pure-JAX reference mirroring the torch module (gather + normalize + bmm)."""
    t_embed = t_embed.astype(jnp.float32)
    s_embed = s_embed.astype(jnp.float32)
    bsz, layer_num, max_len, dim = t_embed.shape
    sdim = s_embed.shape[-1]
    B = bsz * layer_num
    t_c = t_embed.reshape(B, max_len, dim)
    s_c = s_embed.reshape(B, max_len, sdim)
    idx = window_index(window, B, max_len)
    t_r = jnp.take(t_c.reshape(B * max_len, dim), idx, axis=0)
    s_r = jnp.take(s_c.reshape(B * max_len, sdim), idx, axis=0)

    def angles(center, rounds):
        sub = center[:, :, None, :] - rounds
        nrm = jnp.sqrt(jnp.sum(sub * sub, axis=-1, keepdims=True))
        sub = sub / jnp.maximum(nrm, 1e-12)
        return jnp.einsum('blwd,blvd->blwv', sub, sub, precision='highest')

    mask = jnp.broadcast_to(
        attention_mask.astype(jnp.float32)[:, None, :, None, None],
        (bsz, layer_num, max_len, window, window)).reshape(B, max_len, window, window)
    t_angle = angles(t_c, t_r) * mask
    s_angle = angles(s_c, s_r) * mask
    diff = s_angle - t_angle
    if lossfunc == 'l1loss':
        num = jnp.sum(jnp.abs(diff))
    elif lossfunc == 'l2loss':
        num = jnp.sum(diff * diff)
    else:
        ad = jnp.abs(diff)
        num = jnp.sum(jnp.where(ad < 1.0, 0.5 * diff * diff, ad - 0.5))
    return num / jnp.sum(mask)


if __name__ == "__main__":
    key = jax.random.PRNGKey(0)
    k1, k2 = jax.random.split(key)

    # Small shapes: single-chunk path, all loss functions, f32 and bf16 streaming.
    bsz, layer_num, max_len = 2, 3, 8
    dim, sdim, window = 16, 8, 5

    t32 = jax.random.normal(k1, (bsz, layer_num, max_len, dim), dtype=jnp.float32)
    s32 = jax.random.normal(k2, (bsz, layer_num, max_len, sdim), dtype=jnp.float32)
    attention_mask = jnp.array(
        [[1, 1, 1, 1, 1, 1, 1, 1],
         [1, 1, 1, 1, 1, 1, 0, 0]], dtype=jnp.float32)

    for dtype in (jnp.float32, jnp.bfloat16):
        t_embed = t32.astype(dtype)
        s_embed = s32.astype(dtype)
        for lossfunc in ('l1loss', 'l2loss', 'smoothl1'):
            out = wr_angle_window(t_embed, s_embed, attention_mask,
                                  lossfunc=lossfunc, window=window)
            out = jax.block_until_ready(out)
            ref = jax.block_until_ready(
                _reference(t_embed, s_embed, attention_mask, lossfunc, window))
            assert jnp.allclose(out, ref, rtol=1e-4, atol=1e-5), (
                dtype, lossfunc, float(out), float(ref))

    # Larger sequence: exercises the chunked ("arbitrary") grid axis.
    k3, k4, k5 = jax.random.split(jax.random.PRNGKey(1), 3)
    bsz2, layer_num2, max_len2, dim2, sdim2 = 1, 2, 1024, 32, 16
    t2 = jax.random.normal(k3, (bsz2, layer_num2, max_len2, dim2), dtype=jnp.float32)
    s2 = jax.random.normal(k4, (bsz2, layer_num2, max_len2, sdim2), dtype=jnp.float32)
    am2 = (jax.random.uniform(k5, (bsz2, max_len2)) > 0.1).astype(jnp.float32)
    out = jax.block_until_ready(
        wr_angle_window(t2, s2, am2, lossfunc='l1loss', window=window))
    ref = jax.block_until_ready(_reference(t2, s2, am2, 'l1loss', window))
    assert jnp.allclose(out, ref, rtol=2e-4, atol=1e-5), (float(out), float(ref))

    print("KERNEL_OK")
</pallas_src>

<mosaic_0001>
module attributes {stable_mosaic.version = 11 : i64} {
  func.func @_wr_angle_kernel(%arg0: i32, %arg1: i32, %arg2: memref<1x1x16x12xf32, #tpu.memory_space<vmem>>, %arg3: memref<1x1x8x12xf32, #tpu.memory_space<vmem>>, %arg4: memref<1x1x8xf32, #tpu.memory_space<vmem>>, %arg5: memref<1x1x1xf32, #tpu.memory_space<vmem>>) attributes {dimension_semantics = [#tpu.dimension_semantics<parallel>, #tpu.dimension_semantics<arbitrary>], iteration_bounds = array<i64: 6, 1>, scalar_prefetch = 0 : i64, scratch_operands = 0 : i64, tpu.core_type = #tpu.core_type<tc>, window_params = [{transform_indices = @transform_0, window_bounds = array<i64: 1, 1, 16, 12>}, {transform_indices = @transform_1, window_bounds = array<i64: 1, 1, 8, 12>}, {transform_indices = @transform_2, window_bounds = array<i64: 1, 1, 8>}, {transform_indices = @transform_3, window_bounds = array<i64: 1, 1, 1>}]} {
    %c0 = arith.constant 0 : index
    %c0_0 = arith.constant 0 : index
    %c0_1 = arith.constant 0 : index
    %c0_2 = arith.constant 0 : index
    %0 = vector.load %arg2[%c0, %c0_0, %c0_1, %c0_2] : memref<1x1x16x12xf32, #tpu.memory_space<vmem>>, vector<1x1x16x12xf32>
    %1 = vector.shape_cast %0 : vector<1x1x16x12xf32> to vector<16x12xf32>
    %2 = vector.extract_strided_slice %1 {offsets = [0, 2], sizes = [16, 8], strides = [1, 1]} : vector<16x12xf32> to vector<16x8xf32>
    %3 = vector.extract_strided_slice %1 {offsets = [0, 0], sizes = [16, 8], strides = [1, 1]} : vector<16x12xf32> to vector<16x8xf32>
    %4 = arith.subf %2, %3 : vector<16x8xf32>
    %5 = vector.extract_strided_slice %1 {offsets = [0, 1], sizes = [16, 8], strides = [1, 1]} : vector<16x12xf32> to vector<16x8xf32>
    %6 = arith.subf %2, %5 : vector<16x8xf32>
    %7 = vector.extract_strided_slice %1 {offsets = [0, 3], sizes = [16, 8], strides = [1, 1]} : vector<16x12xf32> to vector<16x8xf32>
    %8 = arith.subf %2, %7 : vector<16x8xf32>
    %9 = vector.extract_strided_slice %1 {offsets = [0, 4], sizes = [16, 8], strides = [1, 1]} : vector<16x12xf32> to vector<16x8xf32>
    %10 = arith.subf %2, %9 : vector<16x8xf32>
    %11 = arith.mulf %4, %4 : vector<16x8xf32>
    %cst = arith.constant dense<0.000000e+00> : vector<8xf32>
    %12 = vector.multi_reduction <add>, %11, %cst [0] : vector<16x8xf32> to vector<8xf32>
    %13 = vector.shape_cast %12 : vector<8xf32> to vector<1x8xf32>
    %14 = arith.mulf %6, %6 : vector<16x8xf32>
    %cst_3 = arith.constant dense<0.000000e+00> : vector<8xf32>
    %15 = vector.multi_reduction <add>, %14, %cst_3 [0] : vector<16x8xf32> to vector<8xf32>
    %16 = vector.shape_cast %15 : vector<8xf32> to vector<1x8xf32>
    %17 = arith.mulf %8, %8 : vector<16x8xf32>
    %cst_4 = arith.constant dense<0.000000e+00> : vector<8xf32>
    %18 = vector.multi_reduction <add>, %17, %cst_4 [0] : vector<16x8xf32> to vector<8xf32>
    %19 = vector.shape_cast %18 : vector<8xf32> to vector<1x8xf32>
    %20 = arith.mulf %10, %10 : vector<16x8xf32>
    %cst_5 = arith.constant dense<0.000000e+00> : vector<8xf32>
    %21 = vector.multi_reduction <add>, %20, %cst_5 [0] : vector<16x8xf32> to vector<8xf32>
    %22 = vector.shape_cast %21 : vector<8xf32> to vector<1x8xf32>
    %cst_6 = arith.constant 1.000000e-24 : f32
    %23 = vector.broadcast %cst_6 : f32 to vector<1x8xf32>
    %24 = arith.maximumf %13, %23 : vector<1x8xf32>
    %25 = math.rsqrt %24 : vector<1x8xf32>
    %cst_7 = arith.constant 1.000000e-24 : f32
    %26 = vector.broadcast %cst_7 : f32 to vector<1x8xf32>
    %27 = arith.maximumf %16, %26 : vector<1x8xf32>
    %28 = math.rsqrt %27 : vector<1x8xf32>
    %cst_8 = arith.constant 1.000000e-24 : f32
    %29 = vector.broadcast %cst_8 : f32 to vector<1x8xf32>
    %30 = arith.maximumf %19, %29 : vector<1x8xf32>
    %31 = math.rsqrt %30 : vector<1x8xf32>
    %cst_9 = arith.constant 1.000000e-24 : f32
    %32 = vector.broadcast %cst_9 : f32 to vector<1x8xf32>
    %33 = arith.maximumf %22, %32 : vector<1x8xf32>
    %34 = math.rsqrt %33 : vector<1x8xf32>
    %35 = arith.mulf %13, %25 : vector<1x8xf32>
    %36 = arith.mulf %35, %25 : vector<1x8xf32>
    %37 = arith.mulf %16, %28 : vector<1x8xf32>
    %38 = arith.mulf %37, %28 : vector<1x8xf32>
    %39 = arith.mulf %19, %31 : vector<1x8xf32>
    %40 = arith.mulf %39, %31 : vector<1x8xf32>
    %41 = arith.mulf %22, %34 : vector<1x8xf32>
    %42 = arith.mulf %41, %34 : vector<1x8xf32>
    %43 = arith.mulf %4, %6 : vector<16x8xf32>
    %cst_10 = arith.constant dense<0.000000e+00> : vector<8xf32>
    %44 = vector.multi_reduction <add>, %43, %cst_10 [0] : vector<16x8xf32> to vector<8xf32>
    %45 = vector.shape_cast %44 : vector<8xf32> to vector<1x8xf32>
    %46 = arith.mulf %45, %25 : vector<1x8xf32>
    %47 = arith.mulf %46, %28 : vector<1x8xf32>
    %48 = arith.mulf %4, %8 : vector<16x8xf32>
    %cst_11 = arith.constant dense<0.000000e+00> : vector<8xf32>
    %49 = vector.multi_reduction <add>, %48, %cst_11 [0] : vector<16x8xf32> to vector<8xf32>
    %50 = vector.shape_cast %49 : vector<8xf32> to vector<1x8xf32>
    %51 = arith.mulf %50, %25 : vector<1x8xf32>
    %52 = arith.mulf %51, %31 : vector<1x8xf32>
    %53 = arith.mulf %4, %10 : vector<16x8xf32>
    %cst_12 = arith.constant dense<0.000000e+00> : vector<8xf32>
    %54 = vector.multi_reduction <add>, %53, %cst_12 [0] : vector<16x8xf32> to vector<8xf32>
    %55 = vector.shape_cast %54 : vector<8xf32> to vector<1x8xf32>
    %56 = arith.mulf %55, %25 : vector<1x8xf32>
    %57 = arith.mulf %56, %34 : vector<1x8xf32>
    %58 = arith.mulf %6, %8 : vector<16x8xf32>
    %cst_13 = arith.constant dense<0.000000e+00> : vector<8xf32>
    %59 = vector.multi_reduction <add>, %58, %cst_13 [0] : vector<16x8xf32> to vector<8xf32>
    %60 = vector.shape_cast %59 : vector<8xf32> to vector<1x8xf32>
    %61 = arith.mulf %60, %28 : vector<1x8xf32>
    %62 = arith.mulf %61, %31 : vector<1x8xf32>
    %63 = arith.mulf %6, %10 : vector<16x8xf32>
    %cst_14 = arith.constant dense<0.000000e+00> : vector<8xf32>
    %64 = vector.multi_reduction <add>, %63, %cst_14 [0] : vector<16x8xf32> to vector<8xf32>
    %65 = vector.shape_cast %64 : vector<8xf32> to vector<1x8xf32>
    %66 = arith.mulf %65, %28 : vector<1x8xf32>
    %67 = arith.mulf %66, %34 : vector<1x8xf32>
    %68 = arith.mulf %8, %10 : vector<16x8xf32>
    %cst_15 = arith.constant dense<0.000000e+00> : vector<8xf32>
    %69 = vector.multi_reduction <add>, %68, %cst_15 [0] : vector<16x8xf32> to vector<8xf32>
    %70 = vector.shape_cast %69 : vector<8xf32> to vector<1x8xf32>
    %71 = arith.mulf %70, %31 : vector<1x8xf32>
    %72 = arith.mulf %71, %34 : vector<1x8xf32>
    %73 = tpu.concatenate %47, %52, %57, %62, %67, %72 in 0 : vector<1x8xf32>, vector<1x8xf32>, vector<1x8xf32>, vector<1x8xf32>, vector<1x8xf32>, vector<1x8xf32> -> vector<6x8xf32>
    %74 = tpu.concatenate %36, %38, %40, %42 in 0 : vector<1x8xf32>, vector<1x8xf32>, vector<1x8xf32>, vector<1x8xf32> -> vector<4x8xf32>
    %c0_16 = arith.constant 0 : index
    %c0_17 = arith.constant 0 : index
    %c0_18 = arith.constant 0 : index
    %c0_19 = arith.constant 0 : index
    %75 = vector.load %arg3[%c0_16, %c0_17, %c0_18, %c0_19] : memref<1x1x8x12xf32, #tpu.memory_space<vmem>>, vector<1x1x8x12xf32>
    %76 = vector.shape_cast %75 : vector<1x1x8x12xf32> to vector<8x12xf32>
    %77 = vector.extract_strided_slice %76 {offsets = [0, 2], sizes = [8, 8], strides = [1, 1]} : vector<8x12xf32> to vector<8x8xf32>
    %78 = vector.extract_strided_slice %76 {offsets = [0, 0], sizes = [8, 8], strides = [1, 1]} : vector<8x12xf32> to vector<8x8xf32>
    %79 = arith.subf %77, %78 : vector<8x8xf32>
    %80 = vector.extract_strided_slice %76 {offsets = [0, 1], sizes = [8, 8], strides = [1, 1]} : vector<8x12xf32> to vector<8x8xf32>
    %81 = arith.subf %77, %80 : vector<8x8xf32>
    %82 = vector.extract_strided_slice %76 {offsets = [0, 3], sizes = [8, 8], strides = [1, 1]} : vector<8x12xf32> to vector<8x8xf32>
    %83 = arith.subf %77, %82 : vector<8x8xf32>
    %84 = vector.extract_strided_slice %76 {offsets = [0, 4], sizes = [8, 8], strides = [1, 1]} : vector<8x12xf32> to vector<8x8xf32>
    %85 = arith.subf %77, %84 : vector<8x8xf32>
    %86 = arith.mulf %79, %79 : vector<8x8xf32>
    %cst_20 = arith.constant dense<0.000000e+00> : vector<8xf32>
    %87 = vector.multi_reduction <add>, %86, %cst_20 [0] : vector<8x8xf32> to vector<8xf32>
    %88 = vector.shape_cast %87 : vector<8xf32> to vector<1x8xf32>
    %89 = arith.mulf %81, %81 : vector<8x8xf32>
    %cst_21 = arith.constant dense<0.000000e+00> : vector<8xf32>
    %90 = vector.multi_reduction <add>, %89, %cst_21 [0] : vector<8x8xf32> to vector<8xf32>
    %91 = vector.shape_cast %90 : vector<8xf32> to vector<1x8xf32>
    %92 = arith.mulf %83, %83 : vector<8x8xf32>
    %cst_22 = arith.constant dense<0.000000e+00> : vector<8xf32>
    %93 = vector.multi_reduction <add>, %92, %cst_22 [0] : vector<8x8xf32> to vector<8xf32>
    %94 = vector.shape_cast %93 : vector<8xf32> to vector<1x8xf32>
    %95 = arith.mulf %85, %85 : vector<8x8xf32>
    %cst_23 = arith.constant dense<0.000000e+00> : vector<8xf32>
    %96 = vector.multi_reduction <add>, %95, %cst_23 [0] : vector<8x8xf32> to vector<8xf32>
    %97 = vector.shape_cast %96 : vector<8xf32> to vector<1x8xf32>
    %cst_24 = arith.constant 1.000000e-24 : f32
    %98 = vector.broadcast %cst_24 : f32 to vector<1x8xf32>
    %99 = arith.maximumf %88, %98 : vector<1x8xf32>
    %100 = math.rsqrt %99 : vector<1x8xf32>
    %cst_25 = arith.constant 1.000000e-24 : f32
    %101 = vector.broadcast %cst_25 : f32 to vector<1x8xf32>
    %102 = arith.maximumf %91, %101 : vector<1x8xf32>
    %103 = math.rsqrt %102 : vector<1x8xf32>
    %cst_26 = arith.constant 1.000000e-24 : f32
    %104 = vector.broadcast %cst_26 : f32 to vector<1x8xf32>
    %105 = arith.maximumf %94, %104 : vector<1x8xf32>
    %106 = math.rsqrt %105 : vector<1x8xf32>
    %cst_27 = arith.constant 1.000000e-24 : f32
    %107 = vector.broadcast %cst_27 : f32 to vector<1x8xf32>
    %108 = arith.maximumf %97, %107 : vector<1x8xf32>
    %109 = math.rsqrt %108 : vector<1x8xf32>
    %110 = arith.mulf %88, %100 : vector<1x8xf32>
    %111 = arith.mulf %110, %100 : vector<1x8xf32>
    %112 = arith.mulf %91, %103 : vector<1x8xf32>
    %113 = arith.mulf %112, %103 : vector<1x8xf32>
    %114 = arith.mulf %94, %106 : vector<1x8xf32>
    %115 = arith.mulf %114, %106 : vector<1x8xf32>
    %116 = arith.mulf %97, %109 : vector<1x8xf32>
    %117 = arith.mulf %116, %109 : vector<1x8xf32>
    %118 = arith.mulf %79, %81 : vector<8x8xf32>
    %cst_28 = arith.constant dense<0.000000e+00> : vector<8xf32>
    %119 = vector.multi_reduction <add>, %118, %cst_28 [0] : vector<8x8xf32> to vector<8xf32>
    %120 = vector.shape_cast %119 : vector<8xf32> to vector<1x8xf32>
    %121 = arith.mulf %120, %100 : vector<1x8xf32>
    %122 = arith.mulf %121, %103 : vector<1x8xf32>
    %123 = arith.mulf %79, %83 : vector<8x8xf32>
    %cst_29 = arith.constant dense<0.000000e+00> : vector<8xf32>
    %124 = vector.multi_reduction <add>, %123, %cst_29 [0] : vector<8x8xf32> to vector<8xf32>
    %125 = vector.shape_cast %124 : vector<8xf32> to vector<1x8xf32>
    %126 = arith.mulf %125, %100 : vector<1x8xf32>
    %127 = arith.mulf %126, %106 : vector<1x8xf32>
    %128 = arith.mulf %79, %85 : vector<8x8xf32>
    %cst_30 = arith.constant dense<0.000000e+00> : vector<8xf32>
    %129 = vector.multi_reduction <add>, %128, %cst_30 [0] : vector<8x8xf32> to vector<8xf32>
    %130 = vector.shape_cast %129 : vector<8xf32> to vector<1x8xf32>
    %131 = arith.mulf %130, %100 : vector<1x8xf32>
    %132 = arith.mulf %131, %109 : vector<1x8xf32>
    %133 = arith.mulf %81, %83 : vector<8x8xf32>
    %cst_31 = arith.constant dense<0.000000e+00> : vector<8xf32>
    %134 = vector.multi_reduction <add>, %133, %cst_31 [0] : vector<8x8xf32> to vector<8xf32>
    %135 = vector.shape_cast %134 : vector<8xf32> to vector<1x8xf32>
    %136 = arith.mulf %135, %103 : vector<1x8xf32>
    %137 = arith.mulf %136, %106 : vector<1x8xf32>
    %138 = arith.mulf %81, %85 : vector<8x8xf32>
    %cst_32 = arith.constant dense<0.000000e+00> : vector<8xf32>
    %139 = vector.multi_reduction <add>, %138, %cst_32 [0] : vector<8x8xf32> to vector<8xf32>
    %140 = vector.shape_cast %139 : vector<8xf32> to vector<1x8xf32>
    %141 = arith.mulf %140, %103 : vector<1x8xf32>
    %142 = arith.mulf %141, %109 : vector<1x8xf32>
    %143 = arith.mulf %83, %85 : vector<8x8xf32>
    %cst_33 = arith.constant dense<0.000000e+00> : vector<8xf32>
    %144 = vector.multi_reduction <add>, %143, %cst_33 [0] : vector<8x8xf32> to vector<8xf32>
    %145 = vector.shape_cast %144 : vector<8xf32> to vector<1x8xf32>
    %146 = arith.mulf %145, %106 : vector<1x8xf32>
    %147 = arith.mulf %146, %109 : vector<1x8xf32>
    %148 = tpu.concatenate %122, %127, %132, %137, %142, %147 in 0 : vector<1x8xf32>, vector<1x8xf32>, vector<1x8xf32>, vector<1x8xf32>, vector<1x8xf32>, vector<1x8xf32> -> vector<6x8xf32>
    %149 = tpu.concatenate %111, %113, %115, %117 in 0 : vector<1x8xf32>, vector<1x8xf32>, vector<1x8xf32>, vector<1x8xf32> -> vector<4x8xf32>
    %c0_34 = arith.constant 0 : index
    %c0_35 = arith.constant 0 : index
    %c0_36 = arith.constant 0 : index
    %150 = vector.load %arg4[%c0_34, %c0_35, %c0_36] : memref<1x1x8xf32, #tpu.memory_space<vmem>>, vector<1x1x8xf32>
    %151 = vector.shape_cast %150 : vector<1x1x8xf32> to vector<1x8xf32>
    %152 = arith.subf %148, %73 : vector<6x8xf32>
    %153 = vector.broadcast %151 : vector<1x8xf32> to vector<6x8xf32>
    %154 = arith.mulf %152, %153 : vector<6x8xf32>
    %155 = math.absf %154 : vector<6x8xf32>
    %156 = arith.subf %149, %74 : vector<4x8xf32>
    %157 = vector.broadcast %151 : vector<1x8xf32> to vector<4x8xf32>
    %158 = arith.mulf %156, %157 : vector<4x8xf32>
    %159 = math.absf %158 : vector<4x8xf32>
    %160 = vector.shape_cast %155 : vector<6x8xf32> to vector<1x6x8xf32>
    %cst_37 = arith.constant dense<0.000000e+00> : vector<1xf32>
    %161 = vector.multi_reduction <add>, %160, %cst_37 [1, 2] : vector<1x6x8xf32> to vector<1xf32>
    %162 = vector.shape_cast %161 : vector<1xf32> to vector<1x1x1xf32>
    %163 = vector.extract %162[0, 0, 0] : f32 from vector<1x1x1xf32>
    %cst_38 = arith.constant 2.000000e+00 : f32
    %164 = arith.mulf %cst_38, %163 : f32
    %165 = vector.shape_cast %159 : vector<4x8xf32> to vector<1x4x8xf32>
    %cst_39 = arith.constant dense<0.000000e+00> : vector<1xf32>
    %166 = vector.multi_reduction <add>, %165, %cst_39 [1, 2] : vector<1x4x8xf32> to vector<1xf32>
    %167 = vector.shape_cast %166 : vector<1xf32> to vector<1x1x1xf32>
    %168 = vector.extract %167[0, 0, 0] : f32 from vector<1x1x1xf32>
    %169 = arith.addf %164, %168 : f32
    %c0_i32 = arith.constant 0 : i32
    %170 = arith.cmpi eq, %arg1, %c0_i32 : i32
    %171 = arith.extui %170 : i1 to i32
    %c0_i32_40 = arith.constant 0 : i32
    %172 = arith.cmpi ne, %171, %c0_i32_40 : i32
    scf.if %172 {
      %cst_47 = arith.constant 0.000000e+00 : f32
      %180 = vector.broadcast %cst_47 : f32 to vector<1x1xf32>
      %c0_48 = arith.constant 0 : index
      %c0_49 = arith.constant 0 : index
      %c0_50 = arith.constant 0 : index
      %181 = vector.load %arg5[%c0_48, %c0_49, %c0_50] : memref<1x1x1xf32, #tpu.memory_space<vmem>>, vector<1x1x1xf32>
      %182 = vector.shape_cast %181 : vector<1x1x1xf32> to vector<1x1xf32>
      %183 = vector.shape_cast %180 : vector<1x1xf32> to vector<1x1x1xf32>
      tpu.vector_store %arg5[%c0_48, %c0_49, %c0_50], %183 {strides = array<i32>} : memref<1x1x1xf32, #tpu.memory_space<vmem>>, vector<1x1x1xf32>,
    } else {
    }
    %c0_41 = arith.constant 0 : index
    %c0_42 = arith.constant 0 : index
    %c0_43 = arith.constant 0 : index
    %173 = vector.load %arg5[%c0_41, %c0_42, %c0_43] : memref<1x1x1xf32, #tpu.memory_space<vmem>>, vector<1x1x1xf32>
    %174 = vector.shape_cast %173 : vector<1x1x1xf32> to vector<1x1xf32>
    %175 = vector.broadcast %169 : f32 to vector<1x1xf32>
    %176 = arith.addf %174, %175 : vector<1x1xf32>
    %c0_44 = arith.constant 0 : index
    %c0_45 = arith.constant 0 : index
    %c0_46 = arith.constant 0 : index
    %177 = vector.load %arg5[%c0_44, %c0_45, %c0_46] : memref<1x1x1xf32, #tpu.memory_space<vmem>>, vector<1x1x1xf32>
    %178 = vector.shape_cast %177 : vector<1x1x1xf32> to vector<1x1xf32>
    %179 = vector.shape_cast %176 : vector<1x1xf32> to vector<1x1x1xf32>
    tpu.vector_store %arg5[%c0_44, %c0_45, %c0_46], %179 {strides = array<i32>} : memref<1x1x1xf32, #tpu.memory_space<vmem>>, vector<1x1x1xf32>,
    return
  }
  func.func @transform_0(%arg0: i32, %arg1: i32) -> (i32, i32, i32, i32) {
    %c0_i32 = arith.constant 0 : i32
    %c0_i32_0 = arith.constant 0 : i32
    %c0_i32_1 = arith.constant 0 : i32
    return %arg0, %arg1, %c0_i32, %c0_i32_0 : i32, i32, i32, i32
  }
  func.func @transform_1(%arg0: i32, %arg1: i32) -> (i32, i32, i32, i32) {
    %c0_i32 = arith.constant 0 : i32
    %c0_i32_0 = arith.constant 0 : i32
    %c0_i32_1 = arith.constant 0 : i32
    return %arg0, %arg1, %c0_i32, %c0_i32_0 : i32, i32, i32, i32
  }
  func.func @transform_2(%arg0: i32, %arg1: i32) -> (i32, i32, i32) {
    %c0_i32 = arith.constant 0 : i32
    %c0_i32_0 = arith.constant 0 : i32
    return %arg0, %c0_i32, %arg1 : i32, i32, i32
  }
  func.func @transform_3(%arg0: i32, %arg1: i32) -> (i32, i32, i32) {
    %c0_i32 = arith.constant 0 : i32
    %c0_i32_0 = arith.constant 0 : i32
    %c0_i32_1 = arith.constant 0 : i32
    return %arg0, %c0_i32, %c0_i32_0 : i32, i32, i32
  }
}

</mosaic_0001>

<llo_original>
// kernel: tpu_custom_call.1
$region0: #{tpu_custom_call.1}
  #allocation0 [shape = 'u32[]', space=smem, size = 0x4, offset = 0x4, fixed_abs, tag = 'smem constant byte address 0x4 - core index']
  #allocation1 [shape = 'u32[144,128]{1,0:T(1,128)}', space=vmem, size = 0x12000, scoped, tag = 'internal scratch']
  %s0 = inlined_call_operand.vmem [shape: f32[6,1,16,12], index: 0, kind: input, shape index: {}]
  %s1 = inlined_call_operand.vmem [shape: f32[6,1,8,12], index: 1, kind: input, shape index: {}]
  %s2 = inlined_call_operand.vmem [shape: f32[6,1,8], index: 2, kind: input, shape index: {}]
  %s3 = inlined_call_operand.vmem [shape: f32[6,1,1], index: 3, kind: output, shape index: {}]
  %s4 = sld [smem:[#allocation0]]
  $region49: #{tpu_custom_call.1} parent=0
    _
  %s6 = ssub.s32 1, %s4
  %s7 = scalar_select 0, %s6, %s4
  loop: start=0, step=1, limit=8
  $region2: #{tpu_custom_call.1} parent=0 // loop_pre_header
    _
  $region3: #{tpu_custom_call.1} parent=0 // loop_header
    %s9 = sphi 0, %s13
    %p10 = scmp.ge.s32.totalorder %s9, 8
    %s16 = sphi 0, %s28
    %s17 = sphi 0, %s24
    %s18 = sphi 0, %s16
    %s19 = sphi 0, %s17
    %s20 = sphi 0, %s18
    %s21 = sphi 0, %s19
    %s33 = sphi 0, %s35
    %s36 = sphi 0, %s33
    %s37 = sphi 0, %s36
    %s53 = sphi 0, %s37
    %s61 = sphi 0, %s63
    %s64 = sphi 0, %s61
    %s65 = sphi 0, %s64
    %s81 = sphi 0, %s65
    %s89 = sphi 0, %s91
    %s92 = sphi 0, %s89
    %s93 = sphi 0, %s92
    %s109 = sphi 0, %s93
    %s115 = sphi 0, %s117
    %s118 = sphi 0, %s115
    %s119 = sphi 0, %s118
    %s135 = sphi 0, %s119
  $region4: #{tpu_custom_call.1} parent=0 // loop_header_branch
    %12 = sbr.rel (%p10) target = $region8
  $region5: #{tpu_custom_call.1} parent=0 // loop_body
    %s14 = ssub.s32 %s9, 1
    %s15 = ssub.s32 %s9, 2
    %s22 = sadd.s32 1, %s17
    %p23 = scmp.ge.s32.totalorder %s22, 1
    %s24 = scalar_select %p23, 0, %s22
    %s25 = sadd.s32 1, %s16
    %s26 = scalar_select %p23, %s25, %s16
    %p27 = scmp.ge.s32.totalorder %s26, 6
    %s28 = scalar_select %p27, 0, %s26
    %s29 = ssub.s32 %s16, %s28
    %s30 = ssub.s32 %s17, %s24
    %s31 = sor.u32 %s29, %s30
    %p32 = scmp.eq.s32.totalorder %s31, 0
    %s34 = sadd.s32 %s33, 1
    %s35 = scalar_select %p32, %s33, %s34
    %p38 = pneg %p32
    %p39 = scmp.eq.s32.totalorder %s9, 5
    %p40 = por %p38, %p39
    %p41 = scmp.ne.s32.totalorder %s33, %s36
    %p42 = scmp.eq.s32.totalorder %s9, 0
    %p43 = por %p41, %p42
    %p44 = scmp.ne.s32.totalorder %s33, %s36
    %p45 = scmp.eq.s32.totalorder %s14, 5
    %p46 = por %p44, %p45
    %p47 = scmp.ne.s32.totalorder %s36, %s37
    %p48 = scmp.eq.s32.totalorder %s14, 0
    %p49 = por %p47, %p48
    %p50 = scmp.ne.s32.totalorder %s36, %s37
    %p51 = scmp.eq.s32.totalorder %s15, 5
    %p52 = por %p50, %p51
    %p54 = scmp.ne.s32.totalorder %s37, %s53
    %p55 = scmp.eq.s32.totalorder %s15, 0
    %p56 = por %p54, %p55
    %s57 = ssub.s32 %s16, %s28
    %s58 = ssub.s32 %s17, %s24
    %s59 = sor.u32 %s57, %s58
    %p60 = scmp.eq.s32.totalorder %s59, 0
    %s62 = sadd.s32 %s61, 1
    %s63 = scalar_select %p60, %s61, %s62
    %p66 = pneg %p60
    %p67 = scmp.eq.s32.totalorder %s9, 5
    %p68 = por %p66, %p67
    %p69 = scmp.ne.s32.totalorder %s61, %s64
    %p70 = scmp.eq.s32.totalorder %s9, 0
    %p71 = por %p69, %p70
    %p72 = scmp.ne.s32.totalorder %s61, %s64
    %p73 = scmp.eq.s32.totalorder %s14, 5
    %p74 = por %p72, %p73
    %p75 = scmp.ne.s32.totalorder %s64, %s65
    %p76 = scmp.eq.s32.totalorder %s14, 0
    %p77 = por %p75, %p76
    %p78 = scmp.ne.s32.totalorder %s64, %s65
    %p79 = scmp.eq.s32.totalorder %s15, 5
    %p80 = por %p78, %p79
    %p82 = scmp.ne.s32.totalorder %s65, %s81
    %p83 = scmp.eq.s32.totalorder %s15, 0
    %p84 = por %p82, %p83
    %s85 = ssub.s32 %s16, %s28
    %s86 = ssub.s32 %s17, %s24
    %s87 = sor.u32 %s85, %s86
    %p88 = scmp.eq.s32.totalorder %s87, 0
    %s90 = sadd.s32 %s89, 1
    %s91 = scalar_select %p88, %s89, %s90
    %p94 = pneg %p88
    %p95 = scmp.eq.s32.totalorder %s9, 5
    %p96 = por %p94, %p95
    %p97 = scmp.ne.s32.totalorder %s89, %s92
    %p98 = scmp.eq.s32.totalorder %s9, 0
    %p99 = por %p97, %p98
    %p100 = scmp.ne.s32.totalorder %s89, %s92
    %p101 = scmp.eq.s32.totalorder %s14, 5
    %p102 = por %p100, %p101
    %p103 = scmp.ne.s32.totalorder %s92, %s93
    %p104 = scmp.eq.s32.totalorder %s14, 0
    %p105 = por %p103, %p104
    %p106 = scmp.ne.s32.totalorder %s92, %s93
    %p107 = scmp.eq.s32.totalorder %s15, 5
    %p108 = por %p106, %p107
    %p110 = scmp.ne.s32.totalorder %s93, %s109
    %p111 = scmp.eq.s32.totalorder %s15, 0
    %p112 = por %p110, %p111
    %s113 = ssub.s32 %s16, %s28
    %p114 = scmp.eq.s32.totalorder %s113, 0
    %s116 = sadd.s32 %s115, 1
    %s117 = scalar_select %p114, %s115, %s116
    %p120 = pneg %p114
    %p121 = scmp.eq.s32.totalorder %s9, 5
    %p122 = por %p120, %p121
    %p123 = scmp.ne.s32.totalorder %s115, %s118
    %p124 = scmp.eq.s32.totalorder %s9, 0
    %p125 = por %p123, %p124
    %p126 = scmp.ne.s32.totalorder %s115, %s118
    %p127 = scmp.eq.s32.totalorder %s14, 5
    %p128 = por %p126, %p127
    %p129 = scmp.ne.s32.totalorder %s118, %s119
    %p130 = scmp.eq.s32.totalorder %s14, 0
    %p131 = por %p129, %p130
    %p132 = scmp.ne.s32.totalorder %s118, %s119
    %p133 = scmp.eq.s32.totalorder %s15, 5
    %p134 = por %p132, %p133
    %p136 = scmp.ne.s32.totalorder %s119, %s135
    %p137 = scmp.eq.s32.totalorder %s15, 0
    %p138 = por %p136, %p137
    %p139 = scmp.le.s32.totalorder 1, %s9
    %p140 = scmp.lt.s32.totalorder %s9, 7
    %p141 = pnand %p139, %p140
    %p142 = pneg %p141
    // Predicated region
    $region9: #{tpu_custom_call.1} parent=5 // pred_check
      _
    $region10: #{tpu_custom_call.1} parent=5 // pred_check_branch
      %144 = sbr.rel (%p141) target = $region12
    $region11: #{tpu_custom_call.1} parent=5 // pred_region
      %s145 = ssub.s32 %s9, 1
    $region12: #{tpu_custom_call.1} parent=5 // pred_fallthru
      _
    %p146 = scmp.lt.s32.totalorder %s9, 6
    // Predicated region
    $region13: #{tpu_custom_call.1} parent=5 // pred_check
      %p147 = pneg %p146
    $region14: #{tpu_custom_call.1} parent=5 // pred_check_branch
      %149 = sbr.rel (%p147) target = $region16
    $region15: #{tpu_custom_call.1} parent=5 // pred_region
      // Predicated region
      $region17: #{tpu_custom_call.1} parent=15 // pred_check
        %p150 = pneg %p43
      $region18: #{tpu_custom_call.1} parent=15 // pred_check_branch
        %152 = sbr.rel (%p150) target = $region20
      $region19: #{tpu_custom_call.1} parent=15 // pred_region
        %p153 = scmp.lt.s32.totalorder %s16, 5
        %s154 = scalar_select %p153, %s16, 5
        %p155 = scmp.lt.s32.totalorder %s17, 0
        %s156 = scalar_select %p155, %s17, 0
        %s157 = smul.addr %s156, 2
        %s158 = smul.addr %s154, 2
        %s159 = sadd.s32 %s157, %s158
        %s160 = smul.addr %s159, 8
        %s161 = scalar_lea.vmem %s0, %s160
      $region20: #{tpu_custom_call.1} parent=15 // pred_fallthru
        _
      // Predicated region
      $region21: #{tpu_custom_call.1} parent=15 // pred_check
        %p162 = pneg %p71
      $region22: #{tpu_custom_call.1} parent=15 // pred_check_branch
        %164 = sbr.rel (%p162) target = $region24
      $region23: #{tpu_custom_call.1} parent=15 // pred_region
        %p165 = scmp.lt.s32.totalorder %s16, 5
        %s166 = scalar_select %p165, %s16, 5
        %p167 = scmp.lt.s32.totalorder %s17, 0
        %s168 = scalar_select %p167, %s17, 0
        %s169 = sadd.s32 %s168, %s166
        %s170 = smul.addr %s169, 8
        %s171 = scalar_lea.vmem %s1, %s170
      $region24: #{tpu_custom_call.1} parent=15 // pred_fallthru
        _
      // Predicated region
      $region25: #{tpu_custom_call.1} parent=15 // pred_check
        %p172 = pneg %p99
      $region26: #{tpu_custom_call.1} parent=15 // pred_check_branch
        %174 = sbr.rel (%p172) target = $region28
      $region27: #{tpu_custom_call.1} parent=15 // pred_region
        %p175 = scmp.lt.s32.totalorder %s16, 5
        %s176 = scalar_select %p175, %s16, 5
        %p177 = scmp.lt.s32.totalorder %s17, 0
        %s178 = scalar_select %p177, %s17, 0
        %s179 = sadd.s32 %s178, %s176
        %s180 = scalar_lea.vmem %s2, %s179
      $region28: #{tpu_custom_call.1} parent=15 // pred_fallthru
        _
    $region16: #{tpu_custom_call.1} parent=5 // pred_fallthru
      _
    %p181 = scmp.le.s32.totalorder 1, %s9
    %p182 = scmp.lt.s32.totalorder %s9, 7
    %p183 = pnand %p181, %p182
    %p184 = pneg %p183
    // Predicated region
    $region29: #{tpu_custom_call.1} parent=5 // pred_check
      _
    $region30: #{tpu_custom_call.1} parent=5 // pred_check_branch
      %186 = sbr.rel (%p183) target = $region32
    $region31: #{tpu_custom_call.1} parent=5 // pred_region
      %s187 = ssub.s32 %s9, 1
      %p188 = scmp.lt.s32.totalorder %s18, 5
      %s189 = scalar_select %p188, %s18, 5
      %p190 = scmp.lt.s32.totalorder %s19, 0
      %s191 = scalar_select %p190, %s19, 0
      %s192 = smul.addr %s191, 2
      %s193 = smul.addr %s189, 2
      %s194 = sadd.s32 %s192, %s193
      %s195 = smul.addr %s194, 8
      %s196 = scalar_lea.vmem %s0, %s195
      %p197 = pneg %p49
      %p198 = pneg %p46
      %p199 = scmp.lt.s32.totalorder %s18, 5
      %s200 = scalar_select %p199, %s18, 5
      %p201 = scmp.lt.s32.totalorder %s19, 0
      %s202 = scalar_select %p201, %s19, 0
      %s203 = sadd.s32 %s202, %s200
      %s204 = smul.addr %s203, 8
      %s205 = scalar_lea.vmem %s1, %s204
      %p206 = pneg %p77
      %p207 = pneg %p74
      %p208 = scmp.lt.s32.totalorder %s18, 5
      %s209 = scalar_select %p208, %s18, 5
      %p210 = scmp.lt.s32.totalorder %s19, 0
      %s211 = scalar_select %p210, %s19, 0
      %s212 = sadd.s32 %s211, %s209
      %s213 = scalar_lea.vmem %s2, %s212
      %p214 = pneg %p105
      %p215 = pneg %p102
      %p216 = pneg %p131
      %p217 = pneg %p128
      %p218 = scmp.lt.s32.totalorder %s18, 5
      %s219 = scalar_select %p218, %s18, 5
      %s220 = scalar_lea.vmem %s3, %s219
      %p221 = scmp.lt.s32.totalorder %s18, 5
      %s222 = scalar_select %p221, %s18, 5
      %p223 = scmp.lt.s32.totalorder %s19, 0
      %s224 = scalar_select %p223, %s19, 0
      %s225 = smul.addr %s224, 2
      %s226 = smul.addr %s222, 2
      %s227 = sadd.s32 %s225, %s226
      %s228 = smul.addr %s227, 8
      %s229 = scalar_lea.vmem %s0, %s228
      %p230 = scmp.lt.s32.totalorder %s18, 5
      %s231 = scalar_select %p230, %s18, 5
      %p232 = scmp.lt.s32.totalorder %s19, 0
      %s233 = scalar_select %p232, %s19, 0
      %s234 = sadd.s32 %s233, %s231
      %s235 = smul.addr %s234, 8
      %s236 = scalar_lea.vmem %s1, %s235
      %p237 = scmp.lt.s32.totalorder %s18, 5
      %s238 = scalar_select %p237, %s18, 5
      %p239 = scmp.lt.s32.totalorder %s19, 0
      %s240 = scalar_select %p239, %s19, 0
      %s241 = sadd.s32 %s240, %s238
      %s242 = scalar_lea.vmem %s2, %s241
      %p243 = scmp.lt.s32.totalorder %s18, 5
      %s244 = scalar_select %p243, %s18, 5
      %s245 = scalar_lea.vmem %s3, %s244
      %v246 = vld [vmem:[%s229] sm:$0xff]
      %v247 = vld [vmem:[%s229 + $0x8] sm:$0xff]
      %250 = vrot.lane.b32.xlu0 %v246, 2
      %v251 = vpop.permute.xlu0 %250
      %252 = vrot.lane.b32.xlu0 %v247, 2
      %v253 = vpop.permute.xlu0 %252
      %v256 = vsub.f32 %v246, %v251
      %v257 = vsub.f32 %v247, %v253
      %258 = vrot.lane.b32.xlu0 %v246, 1
      %v259 = vpop.permute.xlu0 %258
      %260 = vrot.lane.b32.xlu0 %v247, 1
      %v261 = vpop.permute.xlu0 %260
      %v264 = vsub.f32 %v246, %v259
      %v265 = vsub.f32 %v247, %v261
      %266 = vrot.lane.b32.xlu0 %v246, 127
      %v267 = vpop.permute.xlu0 %266
      %268 = vrot.lane.b32.xlu0 %v247, 127
      %v269 = vpop.permute.xlu0 %268
      %v272 = vsub.f32 %v246, %v267
      %v273 = vsub.f32 %v247, %v269
      %274 = vrot.lane.b32.xlu0 %v246, 126
      %v275 = vpop.permute.xlu0 %274
      %276 = vrot.lane.b32.xlu0 %v247, 126
      %v277 = vpop.permute.xlu0 %276
      %v280 = vsub.f32 %v246, %v275
      %v281 = vsub.f32 %v247, %v277
      %v282 = vmul.f32 %v256, %v256
      %v283 = vmul.f32 %v257, %v257
      %vm284 = vcmask 80912
      %v285 = vsel %vm284, %v282, 0.0
      %v286 = vsel %vm284, %v283, 0.0
      %v287 = vadd.f32 %v285, %v286
      %v288 = vrot.slane %v287, 4
      %v289 = vadd.f32 %v287, %v288
      %v290 = vrot.slane %v289, 2
      %v291 = vadd.f32 %v289, %v290
      %v292 = vrot.slane %v291, 1
      %v293 = vadd.f32 %v291, %v292
      %v294 = vmul.f32 %v264, %v264
      %v295 = vmul.f32 %v265, %v265
      %v296 = vsel %vm284, %v294, 0.0
      %v297 = vsel %vm284, %v295, 0.0
      %v298 = vadd.f32 %v296, %v297
      %v299 = vrot.slane %v298, 4
      %v300 = vadd.f32 %v298, %v299
      %v301 = vrot.slane %v300, 2
      %v302 = vadd.f32 %v300, %v301
      %v303 = vrot.slane %v302, 1
      %v304 = vadd.f32 %v302, %v303
      %v305 = vmul.f32 %v272, %v272
      %v306 = vmul.f32 %v273, %v273
      %v307 = vsel %vm284, %v305, 0.0
      %v308 = vsel %vm284, %v306, 0.0
      %v309 = vadd.f32 %v307, %v308
      %v310 = vrot.slane %v309, 4
      %v311 = vadd.f32 %v309, %v310
      %v312 = vrot.slane %v311, 2
      %v313 = vadd.f32 %v311, %v312
      %v314 = vrot.slane %v313, 1
      %v315 = vadd.f32 %v313, %v314
      %v316 = vmul.f32 %v280, %v280
      %v317 = vmul.f32 %v281, %v281
      %v318 = vsel %vm284, %v316, 0.0
      %v319 = vsel %vm284, %v317, 0.0
      %v320 = vadd.f32 %v318, %v319
      %v321 = vrot.slane %v320, 4
      %v322 = vadd.f32 %v320, %v321
      %v323 = vrot.slane %v322, 2
      %v324 = vadd.f32 %v322, %v323
      %v325 = vrot.slane %v324, 1
      %v326 = vadd.f32 %v324, %v325
      %v327 = vmax.f32 %v293, 1e-24
      %v328 = vrsqrt.pop %v327
      %v329 = vmax.f32 %v304, 1e-24
      %v330 = vrsqrt.pop %v329
      %v331 = vmax.f32 %v315, 1e-24
      %v332 = vrsqrt.pop %v331
      %v333 = vmax.f32 %v326, 1e-24
      %v334 = vrsqrt.pop %v333
      %v335 = vmul.f32 %v293, %v328
      %v336 = vmul.f32 %v335, %v328
      %v337 = vmul.f32 %v304, %v330
      %v338 = vmul.f32 %v337, %v330
      %v339 = vmul.f32 %v315, %v332
      %v340 = vmul.f32 %v339, %v332
      %v341 = vmul.f32 %v326, %v334
      %v342 = vmul.f32 %v341, %v334
      %v343 = vmul.f32 %v256, %v264
      %v344 = vmul.f32 %v257, %v265
      %v345 = vsel %vm284, %v343, 0.0
      %v346 = vsel %vm284, %v344, 0.0
      %v347 = vadd.f32 %v345, %v346
      %v348 = vrot.slane %v347, 4
      %v349 = vadd.f32 %v347, %v348
      %v350 = vrot.slane %v349, 2
      %v351 = vadd.f32 %v349, %v350
      %v352 = vrot.slane %v351, 1
      %v353 = vadd.f32 %v351, %v352
      %v354 = vmul.f32 %v353, %v328
      %v355 = vmul.f32 %v354, %v330
      %v356 = vmul.f32 %v256, %v272
      %v357 = vmul.f32 %v257, %v273
      %v358 = vsel %vm284, %v356, 0.0
      %v359 = vsel %vm284, %v357, 0.0
      %v360 = vadd.f32 %v358, %v359
      %v361 = vrot.slane %v360, 4
      %v362 = vadd.f32 %v360, %v361
      %v363 = vrot.slane %v362, 2
      %v364 = vadd.f32 %v362, %v363
      %v365 = vrot.slane %v364, 1
      %v366 = vadd.f32 %v364, %v365
      %v367 = vmul.f32 %v366, %v328
      %v368 = vmul.f32 %v367, %v332
      %v369 = vmul.f32 %v256, %v280
      %v370 = vmul.f32 %v257, %v281
      %v371 = vsel %vm284, %v369, 0.0
      %v372 = vsel %vm284, %v370, 0.0
      %v373 = vadd.f32 %v371, %v372
      %v374 = vrot.slane %v373, 4
      %v375 = vadd.f32 %v373, %v374
      %v376 = vrot.slane %v375, 2
      %v377 = vadd.f32 %v375, %v376
      %v378 = vrot.slane %v377, 1
      %v379 = vadd.f32 %v377, %v378
      %v380 = vmul.f32 %v379, %v328
      %v381 = vmul.f32 %v380, %v334
      %v382 = vmul.f32 %v264, %v272
      %v383 = vmul.f32 %v265, %v273
      %v384 = vsel %vm284, %v382, 0.0
      %v385 = vsel %vm284, %v383, 0.0
      %v386 = vadd.f32 %v384, %v385
      %v387 = vrot.slane %v386, 4
      %v388 = vadd.f32 %v386, %v387
      %v389 = vrot.slane %v388, 2
      %v390 = vadd.f32 %v388, %v389
      %v391 = vrot.slane %v390, 1
      %v392 = vadd.f32 %v390, %v391
      %v393 = vmul.f32 %v392, %v330
      %v394 = vmul.f32 %v393, %v332
      %v395 = vmul.f32 %v264, %v280
      %v396 = vmul.f32 %v265, %v281
      %v397 = vsel %vm284, %v395, 0.0
      %v398 = vsel %vm284, %v396, 0.0
      %v399 = vadd.f32 %v397, %v398
      %v400 = vrot.slane %v399, 4
      %v401 = vadd.f32 %v399, %v400
      %v402 = vrot.slane %v401, 2
      %v403 = vadd.f32 %v401, %v402
      %v404 = vrot.slane %v403, 1
      %v405 = vadd.f32 %v403, %v404
      %v406 = vmul.f32 %v405, %v330
      %v407 = vmul.f32 %v406, %v334
      %v408 = vmul.f32 %v272, %v280
      %v409 = vmul.f32 %v273, %v281
      %v410 = vsel %vm284, %v408, 0.0
      %v411 = vsel %vm284, %v409, 0.0
      %v412 = vadd.f32 %v410, %v411
      %v413 = vrot.slane %v412, 4
      %v414 = vadd.f32 %v412, %v413
      %v415 = vrot.slane %v414, 2
      %v416 = vadd.f32 %v414, %v415
      %v417 = vrot.slane %v416, 1
      %v418 = vadd.f32 %v416, %v417
      %v419 = vmul.f32 %v418, %v332
      %v420 = vmul.f32 %v419, %v334
      %vm421 = vcmask 1040384
      %v422 = vsel %vm421, %v355, %v368
      %vm423 = vcmask 1041408
      %v424 = vsel %vm423, %v422, %v381
      %vm425 = vcmask 1042432
      %v426 = vsel %vm425, %v424, %v394
      %vm427 = vcmask 1043456
      %v428 = vsel %vm427, %v426, %v407
      %vm429 = vcmask 1044480
      %v430 = vsel %vm429, %v428, %v420
      %v431 = vsel %vm421, %v336, %v338
      %v432 = vsel %vm423, %v431, %v340
      %v433 = vsel %vm425, %v432, %v342
      %v434 = vld [vmem:[%s236] sm:$0xff]
      %436 = vrot.lane.b32.xlu0 %v434, 2
      %v437 = vpop.permute.xlu0 %436
      %v439 = vsub.f32 %v434, %v437
      %440 = vrot.lane.b32.xlu0 %v434, 1
      %v441 = vpop.permute.xlu0 %440
      %v443 = vsub.f32 %v434, %v441
      %444 = vrot.lane.b32.xlu0 %v434, 127
      %v445 = vpop.permute.xlu0 %444
      %v447 = vsub.f32 %v434, %v445
      %448 = vrot.lane.b32.xlu0 %v434, 126
      %v449 = vpop.permute.xlu0 %448
      %v451 = vsub.f32 %v434, %v449
      %v452 = vmul.f32 %v439, %v439
      %v453 = vsel %vm284, %v452, 0.0
      %v454 = vrot.slane %v453, 4
      %v455 = vadd.f32 %v453, %v454
      %v456 = vrot.slane %v455, 2
      %v457 = vadd.f32 %v455, %v456
      %v458 = vrot.slane %v457, 1
      %v459 = vadd.f32 %v457, %v458
      %v460 = vmul.f32 %v443, %v443
      %v461 = vsel %vm284, %v460, 0.0
      %v462 = vrot.slane %v461, 4
      %v463 = vadd.f32 %v461, %v462
      %v464 = vrot.slane %v463, 2
      %v465 = vadd.f32 %v463, %v464
      %v466 = vrot.slane %v465, 1
      %v467 = vadd.f32 %v465, %v466
      %v468 = vmul.f32 %v447, %v447
      %v469 = vsel %vm284, %v468, 0.0
      %v470 = vrot.slane %v469, 4
      %v471 = vadd.f32 %v469, %v470
      %v472 = vrot.slane %v471, 2
      %v473 = vadd.f32 %v471, %v472
      %v474 = vrot.slane %v473, 1
      %v475 = vadd.f32 %v473, %v474
      %v476 = vmul.f32 %v451, %v451
      %v477 = vsel %vm284, %v476, 0.0
      %v478 = vrot.slane %v477, 4
      %v479 = vadd.f32 %v477, %v478
      %v480 = vrot.slane %v479, 2
      %v481 = vadd.f32 %v479, %v480
      %v482 = vrot.slane %v481, 1
      %v483 = vadd.f32 %v481, %v482
      %v484 = vmax.f32 %v459, 1e-24
      %v485 = vrsqrt.pop %v484
      %v486 = vmax.f32 %v467, 1e-24
      %v487 = vrsqrt.pop %v486
      %v488 = vmax.f32 %v475, 1e-24
      %v489 = vrsqrt.pop %v488
      %v490 = vmax.f32 %v483, 1e-24
      %v491 = vrsqrt.pop %v490
      %v492 = vmul.f32 %v459, %v485
      %v493 = vmul.f32 %v492, %v485
      %v494 = vmul.f32 %v467, %v487
      %v495 = vmul.f32 %v494, %v487
      %v496 = vmul.f32 %v475, %v489
      %v497 = vmul.f32 %v496, %v489
      %v498 = vmul.f32 %v483, %v491
      %v499 = vmul.f32 %v498, %v491
      %v500 = vmul.f32 %v439, %v443
      %v501 = vsel %vm284, %v500, 0.0
      %v502 = vrot.slane %v501, 4
      %v503 = vadd.f32 %v501, %v502
      %v504 = vrot.slane %v503, 2
      %v505 = vadd.f32 %v503, %v504
      %v506 = vrot.slane %v505, 1
      %v507 = vadd.f32 %v505, %v506
      %v508 = vmul.f32 %v507, %v485
      %v509 = vmul.f32 %v508, %v487
      %v510 = vmul.f32 %v439, %v447
      %v511 = vsel %vm284, %v510, 0.0
      %v512 = vrot.slane %v511, 4
      %v513 = vadd.f32 %v511, %v512
      %v514 = vrot.slane %v513, 2
      %v515 = vadd.f32 %v513, %v514
      %v516 = vrot.slane %v515, 1
      %v517 = vadd.f32 %v515, %v516
      %v518 = vmul.f32 %v517, %v485
      %v519 = vmul.f32 %v518, %v489
      %v520 = vmul.f32 %v439, %v451
      %v521 = vsel %vm284, %v520, 0.0
      %v522 = vrot.slane %v521, 4
      %v523 = vadd.f32 %v521, %v522
      %v524 = vrot.slane %v523, 2
      %v525 = vadd.f32 %v523, %v524
      %v526 = vrot.slane %v525, 1
      %v527 = vadd.f32 %v525, %v526
      %v528 = vmul.f32 %v527, %v485
      %v529 = vmul.f32 %v528, %v491
      %v530 = vmul.f32 %v443, %v447
      %v531 = vsel %vm284, %v530, 0.0
      %v532 = vrot.slane %v531, 4
      %v533 = vadd.f32 %v531, %v532
      %v534 = vrot.slane %v533, 2
      %v535 = vadd.f32 %v533, %v534
      %v536 = vrot.slane %v535, 1
      %v537 = vadd.f32 %v535, %v536
      %v538 = vmul.f32 %v537, %v487
      %v539 = vmul.f32 %v538, %v489
      %v540 = vmul.f32 %v443, %v451
      %v541 = vsel %vm284, %v540, 0.0
      %v542 = vrot.slane %v541, 4
      %v543 = vadd.f32 %v541, %v542
      %v544 = vrot.slane %v543, 2
      %v545 = vadd.f32 %v543, %v544
      %v546 = vrot.slane %v545, 1
      %v547 = vadd.f32 %v545, %v546
      %v548 = vmul.f32 %v547, %v487
      %v549 = vmul.f32 %v548, %v491
      %v550 = vmul.f32 %v447, %v451
      %v551 = vsel %vm284, %v550, 0.0
      %v552 = vrot.slane %v551, 4
      %v553 = vadd.f32 %v551, %v552
      %v554 = vrot.slane %v553, 2
      %v555 = vadd.f32 %v553, %v554
      %v556 = vrot.slane %v555, 1
      %v557 = vadd.f32 %v555, %v556
      %v558 = vmul.f32 %v557, %v489
      %v559 = vmul.f32 %v558, %v491
      %v560 = vsel %vm421, %v509, %v519
      %v561 = vsel %vm423, %v560, %v529
      %v562 = vsel %vm425, %v561, %v539
      %v563 = vsel %vm427, %v562, %v549
      %v564 = vsel %vm429, %v563, %v559
      %v565 = vsel %vm421, %v493, %v495
      %v566 = vsel %vm423, %v565, %v497
      %v567 = vsel %vm425, %v566, %v499
      %v568 = vld [vmem:[%s242] sm:$0x1]
      %v569 = vsub.f32 %v564, %v430
      %v571 = vlaneseq
      %v572 = vshrl.u32 %v571, 7
      %v573 = vsub.s32 0, %v572
      %v574 = vrot.slane %v568, %v573
      %575 = vrot.lane.b32.xlu0 %v574, 2
      %v576 = vpop.permute.xlu0 %575
      %v578 = vmul.f32 %v569, %v576
      %v579 = vand.u32 2147483647, %v578
      %v580 = vsub.f32 %v567, %v433
      %v581 = vmul.f32 %v580, %v576
      %v582 = vand.u32 2147483647, %v581
      %584 = vrot.lane.b32.xlu0 %v579, 126
      %v585 = vpop.permute.xlu0 %584
      %vm587 = vcmask 62464
      %v588 = vsel %vm587, %v585, 0.0
      %589 = vadd.xlane.f32.xlu0 %v588
      %v590 = vpop.xlane.xlu0 %589
      %v591 = vrot.slane %v590, 4
      %v592 = vadd.f32 %v590, %v591
      %v593 = vrot.slane %v592, 2
      %v594 = vadd.f32 %v592, %v593
      %v595 = vrot.slane %v594, 1
      %v596 = vadd.f32 %v594, %v595
      %s597 = vtos %v596
      %s598 = smul.f32 %s597, 2.0
      %600 = vrot.lane.b32.xlu0 %v582, 126
      %v601 = vpop.permute.xlu0 %600
      %vm603 = vcmask 60416
      %v604 = vsel %vm603, %v601, 0.0
      %605 = vadd.xlane.f32.xlu0 %v604
      %v606 = vpop.xlane.xlu0 %605
      %v607 = vrot.slane %v606, 4
      %v608 = vadd.f32 %v606, %v607
      %v609 = vrot.slane %v608, 2
      %v610 = vadd.f32 %v608, %v609
      %v611 = vrot.slane %v610, 1
      %v612 = vadd.f32 %v610, %v611
      %s613 = vtos %v612
      %s614 = sadd.f32 %s598, %s613
      %p615 = scmp.eq.s32.totalorder %s19, 0
      // Predicated region
      $region33: #{tpu_custom_call.1} parent=31 // pred_check
        %p616 = pneg %p615
      $region34: #{tpu_custom_call.1} parent=31 // pred_check_branch
        %618 = sbr.rel (%p616) target = $region36
      $region35: #{tpu_custom_call.1} parent=31 // pred_region
        %vm619 = vcmask 0
        %620 = vst.msk [vmem:[%s245] sm:$0x1] %vm619, 0.0
      $region36: #{tpu_custom_call.1} parent=31 // pred_fallthru
        _
      %v621 = vld [vmem:[%s245] sm:$0x1]
      %v622 = vstv %s614
      %v623 = vadd.f32 %v621, %v622
      %vm624 = vcmask 0
      %625 = vst.msk [vmem:[%s245] sm:$0x1] %vm624, %v623
      %p626 = scmp.lt.s32.totalorder %s18, 5
      %s627 = scalar_select %p626, %s18, 5
      %s628 = scalar_lea.vmem %s3, %s627
      // Predicated region
      $region37: #{tpu_custom_call.1} parent=31 // pred_check
        %p629 = pneg %p128
      $region38: #{tpu_custom_call.1} parent=31 // pred_check_branch
        %631 = sbr.rel (%p629) target = $region40
      $region39: #{tpu_custom_call.1} parent=31 // pred_region
        _
      $region40: #{tpu_custom_call.1} parent=31 // pred_fallthru
        _
    $region32: #{tpu_custom_call.1} parent=5 // pred_fallthru
      _
    %p632 = scmp.le.s32.totalorder 2, %s9
    // Predicated region
    $region41: #{tpu_custom_call.1} parent=5 // pred_check
      %p633 = pneg %p632
    $region42: #{tpu_custom_call.1} parent=5 // pred_check_branch
      %635 = sbr.rel (%p633) target = $region44
    $region43: #{tpu_custom_call.1} parent=5 // pred_region
      %s636 = ssub.s32 %s9, 2
      // Predicated region
      $region45: #{tpu_custom_call.1} parent=43 // pred_check
        %p637 = pneg %p134
      $region46: #{tpu_custom_call.1} parent=43 // pred_check_branch
        %639 = sbr.rel (%p637) target = $region48
      $region47: #{tpu_custom_call.1} parent=43 // pred_region
        %p640 = scmp.lt.s32.totalorder %s20, 5
        %s641 = scalar_select %p640, %s20, 5
        %s642 = scalar_lea.vmem %s3, %s641
      $region48: #{tpu_custom_call.1} parent=43 // pred_fallthru
        _
    $region44: #{tpu_custom_call.1} parent=5 // pred_fallthru
      _
  $region6: #{tpu_custom_call.1} parent=0 // loop_footer
    %s13 = sadd.s32 1, %s9
  $region7: #{tpu_custom_call.1} parent=0 // loop_footer_branch
    %8 = sbr.rel target = $region3
  $region8: #{tpu_custom_call.1} parent=0 // loop_exit
    _

</llo_original>
